<compile_context>
chip_gen: v5e
topology: v5e:2x2
jax: 0.10.0
libtpu: 0.0.40
codegen_flags: <defaults>
</compile_context>

<pallas_src>
import jax
import jax.numpy as jnp
from jax.experimental import pallas as pl
from jax.experimental.pallas import tpu as pltpu


def _round_up(x, m):
    return ((x + m - 1) // m) * m


def _gamma_beta_kernel(z_ref, w_ref, b_ref, o_ref):
    # z: (B, zdim), w: (zdim, 2C), b: (1, 2C) -> o: (B, 2C) in f32.
    o_ref[...] = (
        jnp.dot(z_ref[...], w_ref[...], preferred_element_type=jnp.float32)
        + b_ref[...]
    ).astype(o_ref.dtype)


def _film_apply_kernel(gamma_ref, beta_ref, x_ref, o_ref):
    # gamma/beta: (ROW_TILE, 1) f32; x/o: (ROW_TILE, LANE_TILE) in x dtype.
    # Pure broadcast-FMA along lanes; compute in the activation dtype so bf16
    # slabs stay bf16 on v6e/v7x.
    g = gamma_ref[...].astype(x_ref.dtype)
    b = beta_ref[...].astype(x_ref.dtype)
    o_ref[...] = x_ref[...] * g + b


def film(x, z, wg, bg, wb, bb, *, max_row_tile=256, max_lane_tile=2048):
    B, C, H, W = x.shape
    HW = H * W
    R = B * C

    # ---- gamma/beta: one fused matmul, single Pallas call (tiny) ----
    w_fused = jnp.concatenate([wg, wb], axis=1)   # (zdim, 2C)
    b_fused = jnp.concatenate([bg, bb], axis=1)   # (1, 2C)
    gb = pl.pallas_call(
        _gamma_beta_kernel,
        out_shape=jax.ShapeDtypeStruct((B, 2 * C), jnp.float32),
    )(z, w_fused, b_fused)
    gamma = gb[:, :C].reshape(R, 1)               # (B*C, 1), row r -> (b=r//C, c=r%C)
    beta = gb[:, C:].reshape(R, 1)

    # ---- choose sublane/lane-dense tiles for the broadcast-FMA ----
    r_min = _round_up(R, 8)
    n_rt = pl.cdiv(r_min, max_row_tile)
    row_tile = _round_up(pl.cdiv(r_min, n_rt), 8)
    r_pad = row_tile * n_rt

    l_min = _round_up(HW, 128)
    n_lt = pl.cdiv(l_min, max_lane_tile)
    lane_tile = _round_up(pl.cdiv(l_min, n_lt), 128)
    hw_pad = lane_tile * n_lt

    # ---- 2D (B*C, HW) layout, zero-padded up to tile multiples ----
    x2d = jnp.pad(x.reshape(R, HW), ((0, r_pad - R), (0, hw_pad - HW)))
    gamma_p = jnp.pad(gamma, ((0, r_pad - R), (0, 0)))
    beta_p = jnp.pad(beta, ((0, r_pad - R), (0, 0)))

    out2d = pl.pallas_call(
        _film_apply_kernel,
        out_shape=jax.ShapeDtypeStruct((r_pad, hw_pad), x.dtype),
        grid_spec=pltpu.PrefetchScalarGridSpec(
            num_scalar_prefetch=0,
            grid=(n_rt, n_lt),
            in_specs=[
                pl.BlockSpec((row_tile, 1), lambda i, j: (i, 0)),         # gamma col
                pl.BlockSpec((row_tile, 1), lambda i, j: (i, 0)),         # beta col
                pl.BlockSpec((row_tile, lane_tile), lambda i, j: (i, j)), # x tile
            ],
            out_specs=pl.BlockSpec((row_tile, lane_tile), lambda i, j: (i, j)),
        ),
        compiler_params=pltpu.CompilerParams(
            dimension_semantics=("parallel", "parallel"),
        ),
    )(gamma_p, beta_p, x2d)

    return out2d[:R, :HW].reshape(B, C, H, W)


if __name__ == "__main__":
    # Small shapes consistent with the module: zdim=32, maskdim=C=4, spatial 16x16.
    B, C, H, W = 2, 4, 16, 16
    zdim = 32

    key = jax.random.PRNGKey(0)
    kx, kz, kwg, kbg, kwb, kbb = jax.random.split(key, 6)

    x = jax.random.normal(kx, (B, C, H, W), dtype=jnp.float32)
    z = jax.random.normal(kz, (B, zdim), dtype=jnp.float32)

    # Deterministic parameter init (torch Linear default-style scale).
    scale = 1.0 / (zdim ** 0.5)
    wg = jax.random.uniform(kwg, (zdim, C), jnp.float32, -scale, scale)
    bg = jax.random.uniform(kbg, (1, C), jnp.float32, -scale, scale)
    wb = jax.random.uniform(kwb, (zdim, C), jnp.float32, -scale, scale)
    bb = jax.random.uniform(kbb, (1, C), jnp.float32, -scale, scale)

    out = film(x, z, wg, bg, wb, bb)
    out = jax.block_until_ready(out)

    # Plain-JAX reference check.
    gamma_ref = z @ wg + bg
    beta_ref = z @ wb + bb
    ref = gamma_ref[:, :, None, None] * x + beta_ref[:, :, None, None]
    assert out.shape == ref.shape, "shape mismatch vs reference"
    assert jnp.allclose(out, ref, atol=1e-5, rtol=1e-5), "mismatch vs reference"

    print("KERNEL_OK")
</pallas_src>

<mosaic_0001>
module attributes {stable_mosaic.version = 11 : i64} {
  func.func @_gamma_beta_kernel(%arg0: memref<2x32xf32, #tpu.memory_space<vmem>>, %arg1: memref<32x8xf32, #tpu.memory_space<vmem>>, %arg2: memref<1x8xf32, #tpu.memory_space<vmem>>, %arg3: memref<2x8xf32, #tpu.memory_space<vmem>>) attributes {dimension_semantics = [], scalar_prefetch = 0 : i64, scratch_operands = 0 : i64, tpu.core_type = #tpu.core_type<tc>} {
    %c0 = arith.constant 0 : index
    %c0_0 = arith.constant 0 : index
    %0 = vector.load %arg0[%c0, %c0_0] : memref<2x32xf32, #tpu.memory_space<vmem>>, vector<2x32xf32>
    %c0_1 = arith.constant 0 : index
    %c0_2 = arith.constant 0 : index
    %1 = vector.load %arg1[%c0_1, %c0_2] : memref<32x8xf32, #tpu.memory_space<vmem>>, vector<32x8xf32>
    %cst = arith.constant dense<0.000000e+00> : vector<2x8xf32>
    %2 = tpu.matmul %0, %1, %cst {dimension_numbers = #tpu.dot_dimension_numbers<[1], [0], [0], [1], [0, 0, 1, 1], [], []>} : vector<2x32xf32>, vector<32x8xf32>, vector<2x8xf32> -> vector<2x8xf32>
    %c0_3 = arith.constant 0 : index
    %c0_4 = arith.constant 0 : index
    %3 = vector.load %arg2[%c0_3, %c0_4] : memref<1x8xf32, #tpu.memory_space<vmem>>, vector<1x8xf32>
    %4 = vector.broadcast %3 : vector<1x8xf32> to vector<2x8xf32>
    %5 = arith.addf %2, %4 : vector<2x8xf32>
    %c0_5 = arith.constant 0 : index
    %c0_6 = arith.constant 0 : index
    %6 = vector.load %arg3[%c0_5, %c0_6] : memref<2x8xf32, #tpu.memory_space<vmem>>, vector<2x8xf32>
    tpu.vector_store %arg3[%c0_5, %c0_6], %5 {strides = array<i32>} : memref<2x8xf32, #tpu.memory_space<vmem>>, vector<2x8xf32>,
    return
  }
}

</mosaic_0001>

<llo_original>
// kernel: tpu_custom_call.1
$region0: #{tpu_custom_call.1}
  #allocation0 [shape = 'u32[]', space=smem, size = 0x4, offset = 0x4, fixed_abs, tag = 'smem constant byte address 0x4 - core index']
  #allocation1 [shape = 'u32[72,128]{1,0:T(1,128)}', space=vmem, size = 0x9000, scoped, tag = 'internal scratch']
  %s0 = inlined_call_operand.vmem [shape: f32[2,32], index: 0, kind: input, shape index: {}]
  %s1 = inlined_call_operand.vmem [shape: f32[32,8], index: 1, kind: input, shape index: {}]
  %s2 = inlined_call_operand.vmem [shape: f32[1,8], index: 2, kind: input, shape index: {}]
  %s3 = inlined_call_operand.hbm [shape: f32[2,8], index: 3, kind: output, shape index: {}]
  %s4 = sld [smem:[#allocation0]]
  $region22: #{tpu_custom_call.1} parent=0
    _
  %s6 = ssub.s32 1, %s4
  %s7 = scalar_select 0, %s6, %s4
  $region1: #{tpu_custom_call.1} parent=0
    #allocation2 [shape = 'u8[1024]{0}', space=vmem, size = 0x400, scoped, tag = 'output window, operand 0, single buffered']
    #allocation3 [shape = 's32[1]{0}', space=sflag, size = 0x4, scoped, tag = 'scoped memory for tpu_custom_call.1']
    %8 = vsyncpa [#allocation3], 0
    // Predicated region
    $region2: #{tpu_custom_call.1} parent=1 // pred_check
      _
    $region3: #{tpu_custom_call.1} parent=1 // pred_check_branch
      %10 = sbr.rel (0) target = $region5
    $region4: #{tpu_custom_call.1} parent=1 // pred_region
      _
    $region5: #{tpu_custom_call.1} parent=1 // pred_fallthru
      _
    // Predicated region
    $region6: #{tpu_custom_call.1} parent=1 // pred_check
      _
    $region7: #{tpu_custom_call.1} parent=1 // pred_check_branch
      %12 = sbr.rel (0) target = $region9
    $region8: #{tpu_custom_call.1} parent=1 // pred_region
      _
    $region9: #{tpu_custom_call.1} parent=1 // pred_fallthru
      _
    // Predicated region
    $region10: #{tpu_custom_call.1} parent=1 // pred_check
      _
    $region11: #{tpu_custom_call.1} parent=1 // pred_check_branch
      %14 = sbr.rel (0) target = $region13
    $region12: #{tpu_custom_call.1} parent=1 // pred_region
      _
    $region13: #{tpu_custom_call.1} parent=1 // pred_fallthru
      _
    %v15 = vld [vmem:[%s0] sm:$0x3]
    %v16 = vld [vmem:[%s1] sm:$0xff]
    %v17 = vld [vmem:[%s1 + $0x8] sm:$0xff]
    %v18 = vld [vmem:[%s1 + $0x10] sm:$0xff]
    %v19 = vld [vmem:[%s1 + $0x18] sm:$0xff]
    %v20 = vld [vmem:[%s2] sm:$0x1]
    %v22 = vperm.slane %v20, 0
    %vm24 = vcmask 261120
    %v26 = vsel %vm24, %v15, 0
    %28 = vmatpush.msra.mxu0 0.0
    %29 = vmatpush.msra.mxu0 0.0
    %30 = vmatpush.msra.mxu0 0.0
    %31 = vmatpush.msra.mxu0 0.0
    %32 = vmatpush.msra.mxu0 0.0
    %33 = vmatpush.msra.mxu0 0.0
    %34 = vmatpush.msra.mxu0 0.0
    %35 = vmatpush.msra.mxu0 0.0
    %36 = vmatpush.msra.mxu0 0.0
    %37 = vmatpush.msra.mxu0 0.0
    %38 = vmatpush.msra.mxu0 0.0
    %39 = vmatpush.msra.mxu0 0.0
    %40 = vmatpush.msra.mxu0 %v19
    %41 = vmatpush.msra.mxu0 %v18
    %42 = vmatpush.msra.mxu0 %v17
    %43 = vmatpush.msra.mxu0 %v16
    %44 = vmatmul.f32.gmra.mxu0 %v26
    %v45 = vpop.f32.mrf.mxu0
    %v46 = vadd.f32 %v22, %v45
    %47 = vdwg.mxu0
    %vm48 = vcmask 58368
    %49 = vst.msk [vmem:[#allocation2] sm:$0x3] %vm48, %v46
    // Predicated region
    $region14: #{tpu_custom_call.1} parent=1 // pred_check
      _
    $region15: #{tpu_custom_call.1} parent=1 // pred_check_branch
      %51 = sbr.rel (0) target = $region17
    $region16: #{tpu_custom_call.1} parent=1 // pred_region
      %53 = vsyncadd [#allocation3], 0
      %s55 = sshll.u32 [#allocation2], 4
      %s56 = int_to_ptr.vmem [resolvable:$true] %s55
      %s57 = sshll.u32 %s3, 4
      %s58 = int_to_ptr.hbm [resolvable:$true] %s57
      %60 = dma.vmem_to_hbm [thread:$0]  %s56, 32, %s58, [#allocation3]
    $region17: #{tpu_custom_call.1} parent=1 // pred_fallthru
      _
    // Predicated region
    $region18: #{tpu_custom_call.1} parent=1 // pred_check
      _
    $region19: #{tpu_custom_call.1} parent=1 // pred_check_branch
      %62 = sbr.rel (0) target = $region21
    $region20: #{tpu_custom_call.1} parent=1 // pred_region
      %64 = dma.done [#allocation3], 32
    $region21: #{tpu_custom_call.1} parent=1 // pred_fallthru
      _
    %65 = vsyncpa [#allocation3], 1

</llo_original>
